<compile_context>
chip_gen: v6e
topology: v6e:2x2x1
jax: 0.10.0
libtpu: 0.0.40
codegen_flags: <defaults>
</compile_context>

<pallas_src>
import numpy as np
import jax
import jax.numpy as jnp
from jax import lax
from jax.experimental import pallas as pl
from jax.experimental.pallas import tpu as pltpu

# ---- small synthetic shapes consistent with the module ----
N, CIN, H, W = 2, 3, 16, 16        # residual input is 3-channel (mean/std len 3)
COUT = 32                          # encoder.num_features
NUM_CLASSES = 4
KH = KW = 3
K_TAPS = KH * KW * CIN             # 27
KPAD = 32                          # conv contraction dim padded 27 -> 32
HEAD_PAD = 128                     # fused head output padded to one full lane group
HW = H * W
MEAN = (-0.5, -0.5, -0.5)
STD = (0.5, 0.5, 0.5)


def _pick_grid_steps(n):
    # v7x has 2 TensorCores/chip: give each core one fat step. Everywhere else
    # (v5e/v6e: single TC, serial grid) one step avoids per-step overhead.
    try:
        kind = jax.devices()[0].device_kind.lower()
    except Exception:
        kind = ""
    steps = 2 if "v7" in kind else 1
    return steps if n % steps == 0 else 1


NSTEPS = _pick_grid_steps(N)
NB = N // NSTEPS                   # images per grid step


def _res_model_kernel(patch_ref, wconv_ref, bconv_ref, whead_ref, bhead_ref,
                      out_ref):
    # patch_ref: (1, NB*HW, KPAD) bf16  im2col rows for this step's images
    # wconv_ref: (KPAD, COUT)     bf16  conv weight, 1/std folded, rows 27..31 zero
    # bconv_ref: (1, COUT)        f32
    # whead_ref: (COUT, HEAD_PAD) f32   fused [type | flag | zeros] head weights
    # bhead_ref: (1, HEAD_PAD)    f32   fused head bias
    # out_ref:   (1, NB, HEAD_PAD) f32  fused head logits for this step
    rows = patch_ref[0]                                             # (NB*HW, KPAD)

    # Conv-as-matmul + bias + ReLU, one MXU pass for all images of this step.
    feat = jnp.dot(rows, wconv_ref[...], preferred_element_type=jnp.float32)
    feat = jnp.maximum(feat + bconv_ref[...], 0.0)                  # (NB*HW, COUT)

    # GlobalAvgPool2d(flatten=True); Dropout(p=0) is the identity.
    pooled = jnp.sum(feat.reshape(NB, HW, COUT), axis=1) * jnp.float32(1.0 / HW)

    # Both classifier heads fused into one lane-dense batched matmul.
    heads = jnp.dot(pooled, whead_ref[...],
                    preferred_element_type=jnp.float32) + bhead_ref[...]
    out_ref[0] = heads                                              # (NB, HEAD_PAD)


@jax.jit
def residual_only_forward(x_nchw, params):
    # ---- layout / normalization plumbing (wrapper-side, tiny) ----
    # Mean subtraction must precede zero padding (border correctness);
    # the 1/std scale is folded into the conv weight below (exact).
    x = x_nchw.astype(jnp.float32) - params["mean"].reshape(1, CIN, 1, 1)

    # im2col in ONE fused HLO. Output channel ordering is channel-major:
    # out[n, c*9 + (dy*3+dx), y, x] = x_pad[n, c, y+dy, x+dx].
    patches = lax.conv_general_dilated_patches(
        x, filter_shape=(KH, KW), window_strides=(1, 1),
        padding=((1, 1), (1, 1)),
        dimension_numbers=("NCHW", "OIHW", "NCHW"))                 # (N, 27, H, W)
    patches = jnp.transpose(patches, (0, 2, 3, 1)).reshape(N, HW, K_TAPS)
    patches = jnp.pad(patches, ((0, 0), (0, 0), (0, KPAD - K_TAPS)))
    patches = patches.reshape(NSTEPS, NB * HW, KPAD).astype(jnp.bfloat16)

    # Conv weight [KH,KW,CIN,COUT] -> rows ordered [CIN,KH,KW] to match patches,
    # with 1/std folded per input channel, padded 27 -> 32, cast to bf16.
    inv_std = (1.0 / params["std"]).reshape(1, 1, CIN, 1)
    wconv_mat = jnp.transpose(params["wconv"] * inv_std,
                              (2, 0, 1, 3)).reshape(K_TAPS, COUT)
    wconv_mat = jnp.pad(wconv_mat, ((0, KPAD - K_TAPS), (0, 0))).astype(jnp.bfloat16)
    bconv = params["bconv"].reshape(1, COUT).astype(jnp.float32)

    # Fuse type (COUT,NUM_CLASSES) and flag (COUT,1) heads into (COUT, HEAD_PAD).
    whead = jnp.zeros((COUT, HEAD_PAD), jnp.float32)
    whead = whead.at[:, :NUM_CLASSES].set(params["wt"])
    whead = whead.at[:, NUM_CLASSES:NUM_CLASSES + 1].set(params["wf"])
    bhead = jnp.zeros((1, HEAD_PAD), jnp.float32)
    bhead = bhead.at[:, :NUM_CLASSES].set(params["bt"][0])
    bhead = bhead.at[:, NUM_CLASSES].set(params["bf"][0, 0])

    out = pl.pallas_call(
        _res_model_kernel,
        out_shape=jax.ShapeDtypeStruct((NSTEPS, NB, HEAD_PAD), jnp.float32),
        grid_spec=pltpu.PrefetchScalarGridSpec(
            num_scalar_prefetch=0,
            grid=(NSTEPS,),
            in_specs=[
                pl.BlockSpec((1, NB * HW, KPAD), lambda s: (s, 0, 0)),  # patches
                pl.BlockSpec((KPAD, COUT), lambda s: (0, 0)),           # conv weight
                pl.BlockSpec((1, COUT), lambda s: (0, 0)),              # conv bias
                pl.BlockSpec((COUT, HEAD_PAD), lambda s: (0, 0)),       # fused heads W
                pl.BlockSpec((1, HEAD_PAD), lambda s: (0, 0)),          # fused heads b
            ],
            out_specs=pl.BlockSpec((1, NB, HEAD_PAD), lambda s: (s, 0, 0)),
        ),
        compiler_params=pltpu.CompilerParams(
            dimension_semantics=("parallel",)),
    )(patches, wconv_mat, bconv, whead, bhead)

    logits = out.reshape(N, HEAD_PAD)
    return {
        "pred_modification_flag": logits[:, NUM_CLASSES:NUM_CLASSES + 1],  # [N, 1]
        "pred_modification_type": logits[:, :NUM_CLASSES],                 # [N, NUM_CLASSES]
    }


def make_params(key):
    ks = jax.random.split(key, 6)
    # Conv2d weight (PyTorch [COUT, CIN, KH, KW]) stored here as [KH, KW, CIN, COUT]
    wconv = 0.1 * jax.random.normal(ks[0], (KH, KW, CIN, COUT), jnp.float32)
    bconv = 0.1 * jax.random.normal(ks[1], (1, COUT), jnp.float32)
    # Linear weights (PyTorch [out, in]) stored as [in, out]
    wt = 0.1 * jax.random.normal(ks[2], (COUT, NUM_CLASSES), jnp.float32)
    bt = 0.1 * jax.random.normal(ks[3], (1, NUM_CLASSES), jnp.float32)
    wf = 0.1 * jax.random.normal(ks[4], (COUT, 1), jnp.float32)
    bf = 0.1 * jax.random.normal(ks[5], (1, 1), jnp.float32)
    mean = jnp.array(MEAN, jnp.float32)
    std = jnp.array(STD, jnp.float32)
    return dict(wconv=wconv, bconv=bconv, wt=wt, bt=bt, wf=wf, bf=bf,
                mean=mean, std=std)


def reference_forward(x_nchw, params):
    # Pure-JAX reference (NCHW, un-fused, f32) for correctness checking.
    mean = params["mean"].reshape(1, CIN, 1, 1)
    std = params["std"].reshape(1, CIN, 1, 1)
    xn = (x_nchw - mean) / std
    w_oihw = jnp.transpose(params["wconv"], (3, 2, 0, 1))          # [COUT, CIN, KH, KW]
    y = lax.conv_general_dilated(
        xn, w_oihw, window_strides=(1, 1), padding=((1, 1), (1, 1)),
        dimension_numbers=("NCHW", "OIHW", "NCHW"))
    y = y + params["bconv"].reshape(1, COUT, 1, 1)
    y = jnp.maximum(y, 0.0)
    pooled = jnp.mean(y, axis=(2, 3))                              # [N, COUT]
    t = pooled @ params["wt"] + params["bt"]
    f = pooled @ params["wf"] + params["bf"]
    return t, f


if __name__ == "__main__":
    key = jax.random.PRNGKey(0)
    k_x, k_p = jax.random.split(key)
    x = jax.random.normal(k_x, (N, CIN, H, W), jnp.float32)        # NCHW like PyTorch
    params = make_params(k_p)

    out = residual_only_forward(x, params)
    jax.block_until_ready(out)

    ref_t, ref_f = reference_forward(x, params)
    # Tolerance loosened for bf16 patch / conv-weight path (f32 accumulation).
    np.testing.assert_allclose(np.asarray(out["pred_modification_type"]),
                               np.asarray(ref_t), rtol=2e-2, atol=2e-2)
    np.testing.assert_allclose(np.asarray(out["pred_modification_flag"]),
                               np.asarray(ref_f), rtol=2e-2, atol=2e-2)

    assert out["pred_modification_type"].shape == (N, NUM_CLASSES)
    assert out["pred_modification_flag"].shape == (N, 1)
    print("KERNEL_OK")
</pallas_src>

<mosaic_0001>
module attributes {stable_mosaic.version = 11 : i64} {
  func.func @_res_model_kernel(%arg0: i32, %arg1: memref<1x512x32xbf16, #tpu.memory_space<vmem>>, %arg2: memref<32x32xbf16, #tpu.memory_space<vmem>>, %arg3: memref<1x32xf32, #tpu.memory_space<vmem>>, %arg4: memref<32x128xf32, #tpu.memory_space<vmem>>, %arg5: memref<1x128xf32, #tpu.memory_space<vmem>>, %arg6: memref<1x2x128xf32, #tpu.memory_space<vmem>>) attributes {dimension_semantics = [#tpu.dimension_semantics<parallel>], iteration_bounds = array<i64: 1>, scalar_prefetch = 0 : i64, scratch_operands = 0 : i64, tpu.core_type = #tpu.core_type<tc>, window_params = [{transform_indices = @transform_0, window_bounds = array<i64: 1, 512, 32>}, {pipeline_mode = #tpu.pipeline_mode<synchronous>, transform_indices = @transform_1, window_bounds = array<i64: 32, 32>}, {pipeline_mode = #tpu.pipeline_mode<synchronous>, transform_indices = @transform_2, window_bounds = array<i64: 1, 32>}, {pipeline_mode = #tpu.pipeline_mode<synchronous>, transform_indices = @transform_3, window_bounds = array<i64: 32, 128>}, {pipeline_mode = #tpu.pipeline_mode<synchronous>, transform_indices = @transform_4, window_bounds = array<i64: 1, 128>}, {transform_indices = @transform_5, window_bounds = array<i64: 1, 2, 128>}]} {
    %c0 = arith.constant 0 : index
    %c0_0 = arith.constant 0 : index
    %c0_1 = arith.constant 0 : index
    %0 = vector.load %arg1[%c0, %c0_0, %c0_1] : memref<1x512x32xbf16, #tpu.memory_space<vmem>>, vector<1x512x32xbf16>
    %1 = vector.shape_cast %0 : vector<1x512x32xbf16> to vector<512x32xbf16>
    %c0_2 = arith.constant 0 : index
    %c0_3 = arith.constant 0 : index
    %2 = vector.load %arg2[%c0_2, %c0_3] : memref<32x32xbf16, #tpu.memory_space<vmem>>, vector<32x32xbf16>
    %cst = arith.constant dense<0.000000e+00> : vector<512x32xf32>
    %3 = tpu.matmul %1, %2, %cst {dimension_numbers = #tpu.dot_dimension_numbers<[1], [0], [0], [1], [0, 0, 1, 1], [], []>} : vector<512x32xbf16>, vector<32x32xbf16>, vector<512x32xf32> -> vector<512x32xf32>
    %c0_4 = arith.constant 0 : index
    %c0_5 = arith.constant 0 : index
    %4 = vector.load %arg3[%c0_4, %c0_5] : memref<1x32xf32, #tpu.memory_space<vmem>>, vector<1x32xf32>
    %5 = vector.broadcast %4 : vector<1x32xf32> to vector<512x32xf32>
    %6 = arith.addf %3, %5 : vector<512x32xf32>
    %cst_6 = arith.constant 0.000000e+00 : f32
    %7 = vector.broadcast %cst_6 : f32 to vector<512x32xf32>
    %8 = arith.maximumf %6, %7 : vector<512x32xf32>
    %9 = vector.shape_cast %8 : vector<512x32xf32> to vector<2x256x32xf32>
    %cst_7 = arith.constant dense<0.000000e+00> : vector<2x32xf32>
    %10 = vector.multi_reduction <add>, %9, %cst_7 [1] : vector<2x256x32xf32> to vector<2x32xf32>
    %cst_8 = arith.constant 3.906250e-03 : f32
    %11 = vector.broadcast %cst_8 : f32 to vector<2x32xf32>
    %12 = arith.mulf %10, %11 : vector<2x32xf32>
    %c0_9 = arith.constant 0 : index
    %c0_10 = arith.constant 0 : index
    %13 = vector.load %arg4[%c0_9, %c0_10] : memref<32x128xf32, #tpu.memory_space<vmem>>, vector<32x128xf32>
    %cst_11 = arith.constant dense<0.000000e+00> : vector<2x128xf32>
    %14 = tpu.matmul %12, %13, %cst_11 {dimension_numbers = #tpu.dot_dimension_numbers<[1], [0], [0], [1], [0, 0, 1, 1], [], []>} : vector<2x32xf32>, vector<32x128xf32>, vector<2x128xf32> -> vector<2x128xf32>
    %c0_12 = arith.constant 0 : index
    %c0_13 = arith.constant 0 : index
    %15 = vector.load %arg5[%c0_12, %c0_13] : memref<1x128xf32, #tpu.memory_space<vmem>>, vector<1x128xf32>
    %16 = vector.broadcast %15 : vector<1x128xf32> to vector<2x128xf32>
    %17 = arith.addf %14, %16 : vector<2x128xf32>
    %c0_14 = arith.constant 0 : index
    %c0_15 = arith.constant 0 : index
    %c0_16 = arith.constant 0 : index
    %18 = vector.load %arg6[%c0_14, %c0_15, %c0_16] : memref<1x2x128xf32, #tpu.memory_space<vmem>>, vector<1x2x128xf32>
    %19 = vector.shape_cast %18 : vector<1x2x128xf32> to vector<2x128xf32>
    %20 = vector.shape_cast %17 : vector<2x128xf32> to vector<1x2x128xf32>
    tpu.vector_store %arg6[%c0_14, %c0_15, %c0_16], %20 {strides = array<i32>} : memref<1x2x128xf32, #tpu.memory_space<vmem>>, vector<1x2x128xf32>,
    return
  }
  func.func @transform_0(%arg0: i32) -> (i32, i32, i32) {
    %c0_i32 = arith.constant 0 : i32
    %c0_i32_0 = arith.constant 0 : i32
    %c0_i32_1 = arith.constant 0 : i32
    return %arg0, %c0_i32, %c0_i32_0 : i32, i32, i32
  }
  func.func @transform_1(%arg0: i32) -> (i32, i32) {
    %c0_i32 = arith.constant 0 : i32
    %c0_i32_0 = arith.constant 0 : i32
    %c0_i32_1 = arith.constant 0 : i32
    return %c0_i32, %c0_i32_0 : i32, i32
  }
  func.func @transform_2(%arg0: i32) -> (i32, i32) {
    %c0_i32 = arith.constant 0 : i32
    %c0_i32_0 = arith.constant 0 : i32
    %c0_i32_1 = arith.constant 0 : i32
    return %c0_i32, %c0_i32_0 : i32, i32
  }
  func.func @transform_3(%arg0: i32) -> (i32, i32) {
    %c0_i32 = arith.constant 0 : i32
    %c0_i32_0 = arith.constant 0 : i32
    %c0_i32_1 = arith.constant 0 : i32
    return %c0_i32, %c0_i32_0 : i32, i32
  }
  func.func @transform_4(%arg0: i32) -> (i32, i32) {
    %c0_i32 = arith.constant 0 : i32
    %c0_i32_0 = arith.constant 0 : i32
    %c0_i32_1 = arith.constant 0 : i32
    return %c0_i32, %c0_i32_0 : i32, i32
  }
  func.func @transform_5(%arg0: i32) -> (i32, i32, i32) {
    %c0_i32 = arith.constant 0 : i32
    %c0_i32_0 = arith.constant 0 : i32
    %c0_i32_1 = arith.constant 0 : i32
    return %arg0, %c0_i32, %c0_i32_0 : i32, i32, i32
  }
}

</mosaic_0001>

<llo_original>
// kernel: residual_only_forward.1
$region0: #{residual_only_forward.1}
  #allocation0 [shape = 'u32[]', space=smem, size = 0x4, offset = 0x4, fixed_abs, tag = 'smem constant byte address 0x4 - core index']
  #allocation1 [shape = 'u32[144,128]{1,0:T(1,128)}', space=vmem, size = 0x12000, scoped, tag = 'internal scratch']
  %s0 = inlined_call_operand.vmem [shape: bf16[1,512,32], index: 0, kind: input, shape index: {}]
  %s1 = inlined_call_operand.vmem [shape: bf16[32,32], index: 1, kind: input, shape index: {}]
  %s2 = inlined_call_operand.vmem [shape: f32[1,32], index: 2, kind: input, shape index: {}]
  %s3 = inlined_call_operand.vmem [shape: f32[32,128], index: 3, kind: input, shape index: {}]
  %s4 = inlined_call_operand.vmem [shape: f32[1,128], index: 4, kind: input, shape index: {}]
  %s5 = inlined_call_operand.vmem [shape: f32[1,2,128], index: 5, kind: output, shape index: {}]
  %s6 = sld [smem:[#allocation0]]
  $region30: #{residual_only_forward.1} parent=0
    _
  %s8 = ssub.s32 1, %s6
  %s9 = scalar_select 0, %s8, %s6
  // Predicated region
  $region2: #{residual_only_forward.1} parent=0 // pred_check
    _
  $region3: #{residual_only_forward.1} parent=0 // pred_check_branch
    %11 = sbr.rel (0) target = $region5
  $region4: #{residual_only_forward.1} parent=0 // pred_region
    _
  $region5: #{residual_only_forward.1} parent=0 // pred_fallthru
    _
  // Predicated region
  $region6: #{residual_only_forward.1} parent=0 // pred_check
    _
  $region7: #{residual_only_forward.1} parent=0 // pred_check_branch
    %13 = sbr.rel (0) target = $region9
  $region8: #{residual_only_forward.1} parent=0 // pred_region
    _
  $region9: #{residual_only_forward.1} parent=0 // pred_fallthru
    _
  // Predicated region
  $region10: #{residual_only_forward.1} parent=0 // pred_check
    _
  $region11: #{residual_only_forward.1} parent=0 // pred_check_branch
    %15 = sbr.rel (0) target = $region13
  $region12: #{residual_only_forward.1} parent=0 // pred_region
    _
  $region13: #{residual_only_forward.1} parent=0 // pred_fallthru
    _
  // Predicated region
  $region14: #{residual_only_forward.1} parent=0 // pred_check
    _
  $region15: #{residual_only_forward.1} parent=0 // pred_check_branch
    %17 = sbr.rel (0) target = $region17
  $region16: #{residual_only_forward.1} parent=0 // pred_region
    _
  $region17: #{residual_only_forward.1} parent=0 // pred_fallthru
    _
  // Predicated region
  $region18: #{residual_only_forward.1} parent=0 // pred_check
    _
  $region19: #{residual_only_forward.1} parent=0 // pred_check_branch
    %19 = sbr.rel (0) target = $region21
  $region20: #{residual_only_forward.1} parent=0 // pred_region
    _
  $region21: #{residual_only_forward.1} parent=0 // pred_fallthru
    _
  %v21 = vld [vmem:[%s0] sm:$0xf]
  %v22 = vld [vmem:[%s0 + $0x4] sm:$0xf]
  %v23 = vld [vmem:[%s0 + $0x8] sm:$0xf]
  %v24 = vld [vmem:[%s0 + $0xc] sm:$0xf]
  %v25 = vld [vmem:[%s0 + $0x10] sm:$0xf]
  %v26 = vld [vmem:[%s0 + $0x14] sm:$0xf]
  %v27 = vld [vmem:[%s0 + $0x18] sm:$0xf]
  %v28 = vld [vmem:[%s0 + $0x1c] sm:$0xf]
  %v29 = vld [vmem:[%s0 + $0x20] sm:$0xf]
  %v30 = vld [vmem:[%s0 + $0x24] sm:$0xf]
  %v31 = vld [vmem:[%s0 + $0x28] sm:$0xf]
  %v32 = vld [vmem:[%s0 + $0x2c] sm:$0xf]
  %v33 = vld [vmem:[%s0 + $0x30] sm:$0xf]
  %v34 = vld [vmem:[%s0 + $0x34] sm:$0xf]
  %v35 = vld [vmem:[%s0 + $0x38] sm:$0xf]
  %v36 = vld [vmem:[%s0 + $0x3c] sm:$0xf]
  %v37 = vld [vmem:[%s0 + $0x40] sm:$0xf]
  %v38 = vld [vmem:[%s0 + $0x44] sm:$0xf]
  %v39 = vld [vmem:[%s0 + $0x48] sm:$0xf]
  %v40 = vld [vmem:[%s0 + $0x4c] sm:$0xf]
  %v41 = vld [vmem:[%s0 + $0x50] sm:$0xf]
  %v42 = vld [vmem:[%s0 + $0x54] sm:$0xf]
  %v43 = vld [vmem:[%s0 + $0x58] sm:$0xf]
  %v44 = vld [vmem:[%s0 + $0x5c] sm:$0xf]
  %v45 = vld [vmem:[%s0 + $0x60] sm:$0xf]
  %v46 = vld [vmem:[%s0 + $0x64] sm:$0xf]
  %v47 = vld [vmem:[%s0 + $0x68] sm:$0xf]
  %v48 = vld [vmem:[%s0 + $0x6c] sm:$0xf]
  %v49 = vld [vmem:[%s0 + $0x70] sm:$0xf]
  %v50 = vld [vmem:[%s0 + $0x74] sm:$0xf]
  %v51 = vld [vmem:[%s0 + $0x78] sm:$0xf]
  %v52 = vld [vmem:[%s0 + $0x7c] sm:$0xf]
  %v53 = vld [vmem:[%s0 + $0x80] sm:$0xf]
  %v54 = vld [vmem:[%s0 + $0x84] sm:$0xf]
  %v55 = vld [vmem:[%s0 + $0x88] sm:$0xf]
  %v56 = vld [vmem:[%s0 + $0x8c] sm:$0xf]
  %v57 = vld [vmem:[%s0 + $0x90] sm:$0xf]
  %v58 = vld [vmem:[%s0 + $0x94] sm:$0xf]
  %v59 = vld [vmem:[%s0 + $0x98] sm:$0xf]
  %v60 = vld [vmem:[%s0 + $0x9c] sm:$0xf]
  %v61 = vld [vmem:[%s0 + $0xa0] sm:$0xf]
  %v62 = vld [vmem:[%s0 + $0xa4] sm:$0xf]
  %v63 = vld [vmem:[%s0 + $0xa8] sm:$0xf]
  %v64 = vld [vmem:[%s0 + $0xac] sm:$0xf]
  %v65 = vld [vmem:[%s0 + $0xb0] sm:$0xf]
  %v66 = vld [vmem:[%s0 + $0xb4] sm:$0xf]
  %v67 = vld [vmem:[%s0 + $0xb8] sm:$0xf]
  %v68 = vld [vmem:[%s0 + $0xbc] sm:$0xf]
  %v69 = vld [vmem:[%s0 + $0xc0] sm:$0xf]
  %v70 = vld [vmem:[%s0 + $0xc4] sm:$0xf]
  %v71 = vld [vmem:[%s0 + $0xc8] sm:$0xf]
  %v72 = vld [vmem:[%s0 + $0xcc] sm:$0xf]
  %v73 = vld [vmem:[%s0 + $0xd0] sm:$0xf]
  %v74 = vld [vmem:[%s0 + $0xd4] sm:$0xf]
  %v75 = vld [vmem:[%s0 + $0xd8] sm:$0xf]
  %v76 = vld [vmem:[%s0 + $0xdc] sm:$0xf]
  %v77 = vld [vmem:[%s0 + $0xe0] sm:$0xf]
  %v78 = vld [vmem:[%s0 + $0xe4] sm:$0xf]
  %v79 = vld [vmem:[%s0 + $0xe8] sm:$0xf]
  %v80 = vld [vmem:[%s0 + $0xec] sm:$0xf]
  %v81 = vld [vmem:[%s0 + $0xf0] sm:$0xf]
  %v82 = vld [vmem:[%s0 + $0xf4] sm:$0xf]
  %v83 = vld [vmem:[%s0 + $0xf8] sm:$0xf]
  %v84 = vld [vmem:[%s0 + $0xfc] sm:$0xf]
  %v85 = vld [vmem:[%s1] sm:$0xf]
  %v86 = vld [vmem:[%s1 + $0x4] sm:$0xf]
  %v87 = vld [vmem:[%s1 + $0x8] sm:$0xf]
  %v88 = vld [vmem:[%s1 + $0xc] sm:$0xf]
  %v89 = vld [vmem:[%s2] sm:$0x1]
  %v91 = vlaneseq
  %v92 = vshrl.u32 %v91, 7
  %v93 = vsub.s32 0, %v92
  %v94 = vrot.slane %v89, %v93
  %v160 = vunpack.c.l.b16 %v21
  %v161 = vunpack.c.l.b16 %v22
  %v162 = vunpack.c.l.b16 %v23
  %v163 = vunpack.c.l.b16 %v24
  %v164 = vunpack.c.l.b16 %v25
  %v165 = vunpack.c.l.b16 %v26
  %v166 = vunpack.c.l.b16 %v27
  %v167 = vunpack.c.l.b16 %v28
  %v168 = vunpack.c.l.b16 %v29
  %v169 = vunpack.c.l.b16 %v30
  %v170 = vunpack.c.l.b16 %v31
  %v171 = vunpack.c.l.b16 %v32
  %v172 = vunpack.c.l.b16 %v33
  %v173 = vunpack.c.l.b16 %v34
  %v174 = vunpack.c.l.b16 %v35
  %v175 = vunpack.c.l.b16 %v36
  %v176 = vunpack.c.l.b16 %v37
  %v177 = vunpack.c.l.b16 %v38
  %v178 = vunpack.c.l.b16 %v39
  %v179 = vunpack.c.l.b16 %v40
  %v180 = vunpack.c.l.b16 %v41
  %v181 = vunpack.c.l.b16 %v42
  %v182 = vunpack.c.l.b16 %v43
  %v183 = vunpack.c.l.b16 %v44
  %v184 = vunpack.c.l.b16 %v45
  %v185 = vunpack.c.l.b16 %v46
  %v186 = vunpack.c.l.b16 %v47
  %v187 = vunpack.c.l.b16 %v48
  %v188 = vunpack.c.l.b16 %v49
  %v189 = vunpack.c.l.b16 %v50
  %v190 = vunpack.c.l.b16 %v51
  %v191 = vunpack.c.l.b16 %v52
  %v192 = vunpack.c.l.b16 %v53
  %v193 = vunpack.c.l.b16 %v54
  %v194 = vunpack.c.l.b16 %v55
  %v195 = vunpack.c.l.b16 %v56
  %v196 = vunpack.c.l.b16 %v57
  %v197 = vunpack.c.l.b16 %v58
  %v198 = vunpack.c.l.b16 %v59
  %v199 = vunpack.c.l.b16 %v60
  %v200 = vunpack.c.l.b16 %v61
  %v201 = vunpack.c.l.b16 %v62
  %v202 = vunpack.c.l.b16 %v63
  %v203 = vunpack.c.l.b16 %v64
  %v204 = vunpack.c.l.b16 %v65
  %v205 = vunpack.c.l.b16 %v66
  %v206 = vunpack.c.l.b16 %v67
  %v207 = vunpack.c.l.b16 %v68
  %v208 = vunpack.c.l.b16 %v69
  %v209 = vunpack.c.l.b16 %v70
  %v210 = vunpack.c.l.b16 %v71
  %v211 = vunpack.c.l.b16 %v72
  %v212 = vunpack.c.l.b16 %v73
  %v213 = vunpack.c.l.b16 %v74
  %v214 = vunpack.c.l.b16 %v75
  %v215 = vunpack.c.l.b16 %v76
  %v216 = vunpack.c.l.b16 %v77
  %v217 = vunpack.c.l.b16 %v78
  %v218 = vunpack.c.l.b16 %v79
  %v219 = vunpack.c.l.b16 %v80
  %v220 = vunpack.c.l.b16 %v81
  %v221 = vunpack.c.l.b16 %v82
  %v222 = vunpack.c.l.b16 %v83
  %v223 = vunpack.c.l.b16 %v84
  %v224 = vpack.c.b16 %v161, %v160
  %v225 = vpack.c.b16 %v163, %v162
  %v226 = vpack.c.b16 %v165, %v164
  %v227 = vpack.c.b16 %v167, %v166
  %v228 = vpack.c.b16 %v169, %v168
  %v229 = vpack.c.b16 %v171, %v170
  %v230 = vpack.c.b16 %v173, %v172
  %v231 = vpack.c.b16 %v175, %v174
  %v232 = vpack.c.b16 %v177, %v176
  %v233 = vpack.c.b16 %v179, %v178
  %v234 = vpack.c.b16 %v181, %v180
  %v235 = vpack.c.b16 %v183, %v182
  %v236 = vpack.c.b16 %v185, %v184
  %v237 = vpack.c.b16 %v187, %v186
  %v238 = vpack.c.b16 %v189, %v188
  %v239 = vpack.c.b16 %v191, %v190
  %v240 = vpack.c.b16 %v193, %v192
  %v241 = vpack.c.b16 %v195, %v194
  %v242 = vpack.c.b16 %v197, %v196
  %v243 = vpack.c.b16 %v199, %v198
  %v244 = vpack.c.b16 %v201, %v200
  %v245 = vpack.c.b16 %v203, %v202
  %v246 = vpack.c.b16 %v205, %v204
  %v247 = vpack.c.b16 %v207, %v206
  %v248 = vpack.c.b16 %v209, %v208
  %v249 = vpack.c.b16 %v211, %v210
  %v250 = vpack.c.b16 %v213, %v212
  %v251 = vpack.c.b16 %v215, %v214
  %v252 = vpack.c.b16 %v217, %v216
  %v253 = vpack.c.b16 %v219, %v218
  %v254 = vpack.c.b16 %v221, %v220
  %v255 = vpack.c.b16 %v223, %v222
  %v260 = vunpack.c.l.b16 %v85
  %v261 = vunpack.c.l.b16 %v86
  %v262 = vunpack.c.l.b16 %v87
  %v263 = vunpack.c.l.b16 %v88
  %v264 = vpack.c.b16 %v261, %v260
  %v265 = vpack.c.b16 %v263, %v262
  %vm268 = vcmask 261120
  %v270 = vsel %vm268, %v224, 0
  %v273 = vsel %vm268, %v225, 0
  %v276 = vsel %vm268, %v226, 0
  %v279 = vsel %vm268, %v227, 0
  %v282 = vsel %vm268, %v228, 0
  %v285 = vsel %vm268, %v229, 0
  %v288 = vsel %vm268, %v230, 0
  %v291 = vsel %vm268, %v231, 0
  %v294 = vsel %vm268, %v232, 0
  %v297 = vsel %vm268, %v233, 0
  %v300 = vsel %vm268, %v234, 0
  %v303 = vsel %vm268, %v235, 0
  %v306 = vsel %vm268, %v236, 0
  %v309 = vsel %vm268, %v237, 0
  %v312 = vsel %vm268, %v238, 0
  %v315 = vsel %vm268, %v239, 0
  %v318 = vsel %vm268, %v240, 0
  %v321 = vsel %vm268, %v241, 0
  %v324 = vsel %vm268, %v242, 0
  %v327 = vsel %vm268, %v243, 0
  %v330 = vsel %vm268, %v244, 0
  %v333 = vsel %vm268, %v245, 0
  %v336 = vsel %vm268, %v246, 0
  %v339 = vsel %vm268, %v247, 0
  %v342 = vsel %vm268, %v248, 0
  %v345 = vsel %vm268, %v249, 0
  %v348 = vsel %vm268, %v250, 0
  %v351 = vsel %vm268, %v251, 0
  %v354 = vsel %vm268, %v252, 0
  %v357 = vsel %vm268, %v253, 0
  %v360 = vsel %vm268, %v254, 0
  %v363 = vsel %vm268, %v255, 0
  %365 = vmatprep.subr.bf16.mxu0 0
  %366 = vmatpush1.bf16.msra.mxu0 0
  %367 = vmatprep.subr.bf16.mxu0 0
  %368 = vmatpush1.bf16.msra.mxu0 0
  %369 = vmatprep.subr.bf16.mxu0 0
  %370 = vmatpush1.bf16.msra.mxu0 0
  %371 = vmatprep.subr.bf16.mxu0 0
  %372 = vmatpush1.bf16.msra.mxu0 0
  %373 = vmatprep.subr.bf16.mxu0 0
  %374 = vmatpush1.bf16.msra.mxu0 0
  %375 = vmatprep.subr.bf16.mxu0 0
  %376 = vmatpush1.bf16.msra.mxu0 0
  %377 = vmatprep.subr.bf16.mxu0 0
  %378 = vmatpush1.bf16.msra.mxu0 %v265
  %379 = vmatprep.subr.bf16.mxu0 0
  %380 = vmatpush1.bf16.msra.mxu0 %v264
  %381 = vmatprep.subr.bf16.mxu0 0
  %382 = vmatpush2.bf16.msra.mxu0 0
  %383 = vmatprep.subr.bf16.mxu0 0
  %384 = vmatpush2.bf16.msra.mxu0 0
  %385 = vmatprep.subr.bf16.mxu0 0
  %386 = vmatpush2.bf16.msra.mxu0 0
  %387 = vmatprep.subr.bf16.mxu0 0
  %388 = vmatpush2.bf16.msra.mxu0 0
  %389 = vmatprep.subr.bf16.mxu0 0
  %390 = vmatpush2.bf16.msra.mxu0 0
  %391 = vmatprep.subr.bf16.mxu0 0
  %392 = vmatpush2.bf16.msra.mxu0 0
  %393 = vmatprep.subr.bf16.mxu0 0
  %394 = vmatpush2.bf16.msra.mxu0 0
  %395 = vmatprep.subr.bf16.mxu0 0
  %396 = vmatpush2.bf16.msra.mxu0 0
  %397 = vmatprep.mubr.bf16.mxu0 0
  %398 = vmatmul.mubr.bf16.gmra.mxu0 %v270
  %v399 = vpop.f32.mrf.mxu0
  %v400 = vadd.f32 %v94, %v399
  %v401 = vpop.f32.mrf.mxu0
  %v402 = vpop.f32.mrf.mxu0
  %v403 = vadd.f32 %v94, %v402
  %v404 = vpop.f32.mrf.mxu0
  %405 = vmatprep.mubr.bf16.mxu0 0
  %406 = vmatmul.mubr.bf16.gmra.mxu0 %v273
  %v407 = vpop.f32.mrf.mxu0
  %v408 = vadd.f32 %v94, %v407
  %v409 = vpop.f32.mrf.mxu0
  %v410 = vpop.f32.mrf.mxu0
  %v411 = vadd.f32 %v94, %v410
  %v412 = vpop.f32.mrf.mxu0
  %413 = vmatprep.mubr.bf16.mxu0 0
  %414 = vmatmul.mubr.bf16.gmra.mxu0 %v276
  %v415 = vpop.f32.mrf.mxu0
  %v416 = vadd.f32 %v94, %v415
  %v417 = vpop.f32.mrf.mxu0
  %v418 = vpop.f32.mrf.mxu0
  %v419 = vadd.f32 %v94, %v418
  %v420 = vpop.f32.mrf.mxu0
  %421 = vmatprep.mubr.bf16.mxu0 0
  %422 = vmatmul.mubr.bf16.gmra.mxu0 %v279
  %v423 = vpop.f32.mrf.mxu0
  %v424 = vadd.f32 %v94, %v423
  %v425 = vpop.f32.mrf.mxu0
  %v426 = vpop.f32.mrf.mxu0
  %v427 = vadd.f32 %v94, %v426
  %v428 = vpop.f32.mrf.mxu0
  %429 = vmatprep.mubr.bf16.mxu0 0
  %430 = vmatmul.mubr.bf16.gmra.mxu0 %v282
  %v431 = vpop.f32.mrf.mxu0
  %v432 = vadd.f32 %v94, %v431
  %v433 = vpop.f32.mrf.mxu0
  %v434 = vpop.f32.mrf.mxu0
  %v435 = vadd.f32 %v94, %v434
  %v436 = vpop.f32.mrf.mxu0
  %437 = vmatprep.mubr.bf16.mxu0 0
  %438 = vmatmul.mubr.bf16.gmra.mxu0 %v285
  %v439 = vpop.f32.mrf.mxu0
  %v440 = vadd.f32 %v94, %v439
  %v441 = vpop.f32.mrf.mxu0
  %v442 = vpop.f32.mrf.mxu0
  %v443 = vadd.f32 %v94, %v442
  %v444 = vpop.f32.mrf.mxu0
  %445 = vmatprep.mubr.bf16.mxu0 0
  %446 = vmatmul.mubr.bf16.gmra.mxu0 %v288
  %v447 = vpop.f32.mrf.mxu0
  %v448 = vadd.f32 %v94, %v447
  %v449 = vpop.f32.mrf.mxu0
  %v450 = vpop.f32.mrf.mxu0
  %v451 = vadd.f32 %v94, %v450
  %v452 = vpop.f32.mrf.mxu0
  %453 = vmatprep.mubr.bf16.mxu0 0
  %454 = vmatmul.mubr.bf16.gmra.mxu0 %v291
  %v455 = vpop.f32.mrf.mxu0
  %v456 = vadd.f32 %v94, %v455
  %v457 = vpop.f32.mrf.mxu0
  %v458 = vpop.f32.mrf.mxu0
  %v459 = vadd.f32 %v94, %v458
  %v460 = vpop.f32.mrf.mxu0
  %461 = vmatprep.mubr.bf16.mxu0 0
  %462 = vmatmul.mubr.bf16.gmra.mxu0 %v294
  %v463 = vpop.f32.mrf.mxu0
  %v464 = vadd.f32 %v94, %v463
  %v465 = vpop.f32.mrf.mxu0
  %v466 = vpop.f32.mrf.mxu0
  %v467 = vadd.f32 %v94, %v466
  %v468 = vpop.f32.mrf.mxu0
  %469 = vmatprep.mubr.bf16.mxu0 0
  %470 = vmatmul.mubr.bf16.gmra.mxu0 %v297
  %v471 = vpop.f32.mrf.mxu0
  %v472 = vadd.f32 %v94, %v471
  %v473 = vpop.f32.mrf.mxu0
  %v474 = vpop.f32.mrf.mxu0
  %v475 = vadd.f32 %v94, %v474
  %v476 = vpop.f32.mrf.mxu0
  %477 = vmatprep.mubr.bf16.mxu0 0
  %478 = vmatmul.mubr.bf16.gmra.mxu0 %v300
  %v479 = vpop.f32.mrf.mxu0
  %v480 = vadd.f32 %v94, %v479
  %v481 = vpop.f32.mrf.mxu0
  %v482 = vpop.f32.mrf.mxu0
  %v483 = vadd.f32 %v94, %v482
  %v484 = vpop.f32.mrf.mxu0
  %485 = vmatprep.mubr.bf16.mxu0 0
  %486 = vmatmul.mubr.bf16.gmra.mxu0 %v303
  %v487 = vpop.f32.mrf.mxu0
  %v488 = vadd.f32 %v94, %v487
  %v489 = vpop.f32.mrf.mxu0
  %v490 = vpop.f32.mrf.mxu0
  %v491 = vadd.f32 %v94, %v490
  %v492 = vpop.f32.mrf.mxu0
  %493 = vmatprep.mubr.bf16.mxu0 0
  %494 = vmatmul.mubr.bf16.gmra.mxu0 %v306
  %v495 = vpop.f32.mrf.mxu0
  %v496 = vadd.f32 %v94, %v495
  %v497 = vpop.f32.mrf.mxu0
  %v498 = vpop.f32.mrf.mxu0
  %v499 = vadd.f32 %v94, %v498
  %v500 = vpop.f32.mrf.mxu0
  %501 = vmatprep.mubr.bf16.mxu0 0
  %502 = vmatmul.mubr.bf16.gmra.mxu0 %v309
  %v503 = vpop.f32.mrf.mxu0
  %v504 = vadd.f32 %v94, %v503
  %v505 = vpop.f32.mrf.mxu0
  %v506 = vpop.f32.mrf.mxu0
  %v507 = vadd.f32 %v94, %v506
  %v508 = vpop.f32.mrf.mxu0
  %509 = vmatprep.mubr.bf16.mxu0 0
  %510 = vmatmul.mubr.bf16.gmra.mxu0 %v312
  %v511 = vpop.f32.mrf.mxu0
  %v512 = vadd.f32 %v94, %v511
  %v513 = vpop.f32.mrf.mxu0
  %v514 = vpop.f32.mrf.mxu0
  %v515 = vadd.f32 %v94, %v514
  %v516 = vpop.f32.mrf.mxu0
  %517 = vmatprep.mubr.bf16.mxu0 0
  %518 = vmatmul.mubr.bf16.gmra.mxu0 %v315
  %v519 = vpop.f32.mrf.mxu0
  %v520 = vadd.f32 %v94, %v519
  %v521 = vpop.f32.mrf.mxu0
  %v522 = vpop.f32.mrf.mxu0
  %v523 = vadd.f32 %v94, %v522
  %v524 = vpop.f32.mrf.mxu0
  %525 = vmatprep.mubr.bf16.mxu0 0
  %526 = vmatmul.mubr.bf16.gmra.mxu0 %v318
  %v527 = vpop.f32.mrf.mxu0
  %v528 = vadd.f32 %v94, %v527
  %v529 = vpop.f32.mrf.mxu0
  %v530 = vpop.f32.mrf.mxu0
  %v531 = vadd.f32 %v94, %v530
  %v532 = vpop.f32.mrf.mxu0
  %533 = vmatprep.mubr.bf16.mxu0 0
  %534 = vmatmul.mubr.bf16.gmra.mxu0 %v321
  %v535 = vpop.f32.mrf.mxu0
  %v536 = vadd.f32 %v94, %v535
  %v537 = vpop.f32.mrf.mxu0
  %v538 = vpop.f32.mrf.mxu0
  %v539 = vadd.f32 %v94, %v538
  %v540 = vpop.f32.mrf.mxu0
  %541 = vmatprep.mubr.bf16.mxu0 0
  %542 = vmatmul.mubr.bf16.gmra.mxu0 %v324
  %v543 = vpop.f32.mrf.mxu0
  %v544 = vadd.f32 %v94, %v543
  %v545 = vpop.f32.mrf.mxu0
  %v546 = vpop.f32.mrf.mxu0
  %v547 = vadd.f32 %v94, %v546
  %v548 = vpop.f32.mrf.mxu0
  %549 = vmatprep.mubr.bf16.mxu0 0
  %550 = vmatmul.mubr.bf16.gmra.mxu0 %v327
  %v551 = vpop.f32.mrf.mxu0
  %v552 = vadd.f32 %v94, %v551
  %v553 = vpop.f32.mrf.mxu0
  %v554 = vpop.f32.mrf.mxu0
  %v555 = vadd.f32 %v94, %v554
  %v556 = vpop.f32.mrf.mxu0
  %557 = vmatprep.mubr.bf16.mxu0 0
  %558 = vmatmul.mubr.bf16.gmra.mxu0 %v330
  %v559 = vpop.f32.mrf.mxu0
  %v560 = vadd.f32 %v94, %v559
  %v561 = vpop.f32.mrf.mxu0
  %v562 = vpop.f32.mrf.mxu0
  %v563 = vadd.f32 %v94, %v562
  %v564 = vpop.f32.mrf.mxu0
  %565 = vmatprep.mubr.bf16.mxu0 0
  %566 = vmatmul.mubr.bf16.gmra.mxu0 %v333
  %v567 = vpop.f32.mrf.mxu0
  %v568 = vadd.f32 %v94, %v567
  %v569 = vpop.f32.mrf.mxu0
  %v570 = vpop.f32.mrf.mxu0
  %v571 = vadd.f32 %v94, %v570
  %v572 = vpop.f32.mrf.mxu0
  %573 = vmatprep.mubr.bf16.mxu0 0
  %574 = vmatmul.mubr.bf16.gmra.mxu0 %v336
  %v575 = vpop.f32.mrf.mxu0
  %v576 = vadd.f32 %v94, %v575
  %v577 = vpop.f32.mrf.mxu0
  %v578 = vpop.f32.mrf.mxu0
  %v579 = vadd.f32 %v94, %v578
  %v580 = vpop.f32.mrf.mxu0
  %581 = vmatprep.mubr.bf16.mxu0 0
  %582 = vmatmul.mubr.bf16.gmra.mxu0 %v339
  %v583 = vpop.f32.mrf.mxu0
  %v584 = vadd.f32 %v94, %v583
  %v585 = vpop.f32.mrf.mxu0
  %v586 = vpop.f32.mrf.mxu0
  %v587 = vadd.f32 %v94, %v586
  %v588 = vpop.f32.mrf.mxu0
  %589 = vmatprep.mubr.bf16.mxu0 0
  %590 = vmatmul.mubr.bf16.gmra.mxu0 %v342
  %v591 = vpop.f32.mrf.mxu0
  %v592 = vadd.f32 %v94, %v591
  %v593 = vpop.f32.mrf.mxu0
  %v594 = vpop.f32.mrf.mxu0
  %v595 = vadd.f32 %v94, %v594
  %v596 = vpop.f32.mrf.mxu0
  %597 = vmatprep.mubr.bf16.mxu0 0
  %598 = vmatmul.mubr.bf16.gmra.mxu0 %v345
  %v599 = vpop.f32.mrf.mxu0
  %v600 = vadd.f32 %v94, %v599
  %v601 = vpop.f32.mrf.mxu0
  %v602 = vpop.f32.mrf.mxu0
  %v603 = vadd.f32 %v94, %v602
  %v604 = vpop.f32.mrf.mxu0
  %605 = vmatprep.mubr.bf16.mxu0 0
  %606 = vmatmul.mubr.bf16.gmra.mxu0 %v348
  %v607 = vpop.f32.mrf.mxu0
  %v608 = vadd.f32 %v94, %v607
  %v609 = vpop.f32.mrf.mxu0
  %v610 = vpop.f32.mrf.mxu0
  %v611 = vadd.f32 %v94, %v610
  %v612 = vpop.f32.mrf.mxu0
  %613 = vmatprep.mubr.bf16.mxu0 0
  %614 = vmatmul.mubr.bf16.gmra.mxu0 %v351
  %v615 = vpop.f32.mrf.mxu0
  %v616 = vadd.f32 %v94, %v615
  %v617 = vpop.f32.mrf.mxu0
  %v618 = vpop.f32.mrf.mxu0
  %v619 = vadd.f32 %v94, %v618
  %v620 = vpop.f32.mrf.mxu0
  %621 = vmatprep.mubr.bf16.mxu0 0
  %622 = vmatmul.mubr.bf16.gmra.mxu0 %v354
  %v623 = vpop.f32.mrf.mxu0
  %v624 = vadd.f32 %v94, %v623
  %v625 = vpop.f32.mrf.mxu0
  %v626 = vpop.f32.mrf.mxu0
  %v627 = vadd.f32 %v94, %v626
  %v628 = vpop.f32.mrf.mxu0
  %629 = vmatprep.mubr.bf16.mxu0 0
  %630 = vmatmul.mubr.bf16.gmra.mxu0 %v357
  %v631 = vpop.f32.mrf.mxu0
  %v632 = vadd.f32 %v94, %v631
  %v633 = vpop.f32.mrf.mxu0
  %v634 = vpop.f32.mrf.mxu0
  %v635 = vadd.f32 %v94, %v634
  %v636 = vpop.f32.mrf.mxu0
  %637 = vmatprep.mubr.bf16.mxu0 0
  %638 = vmatmul.mubr.bf16.gmra.mxu0 %v360
  %v639 = vpop.f32.mrf.mxu0
  %v640 = vadd.f32 %v94, %v639
  %v641 = vpop.f32.mrf.mxu0
  %v642 = vpop.f32.mrf.mxu0
  %v643 = vadd.f32 %v94, %v642
  %v644 = vpop.f32.mrf.mxu0
  %645 = vmatprep.mubr.bf16.mxu0 0
  %646 = vmatmul.mubr.bf16.gmra.mxu0 %v363
  %v647 = vpop.f32.mrf.mxu0
  %v648 = vadd.f32 %v94, %v647
  %v649 = vpop.f32.mrf.mxu0
  %v650 = vpop.f32.mrf.mxu0
  %v651 = vadd.f32 %v94, %v650
  %v652 = vpop.f32.mrf.mxu0
  %653 = vdwg.mxu0
  %v654 = vmax.f32 %v400, 0.0
  %v655 = vmax.f32 %v403, 0.0
  %v656 = vmax.f32 %v408, 0.0
  %v657 = vmax.f32 %v411, 0.0
  %v658 = vmax.f32 %v416, 0.0
  %v659 = vmax.f32 %v419, 0.0
  %v660 = vmax.f32 %v424, 0.0
  %v661 = vmax.f32 %v427, 0.0
  %v662 = vmax.f32 %v432, 0.0
  %v663 = vmax.f32 %v435, 0.0
  %v664 = vmax.f32 %v440, 0.0
  %v665 = vmax.f32 %v443, 0.0
  %v666 = vmax.f32 %v448, 0.0
  %v667 = vmax.f32 %v451, 0.0
  %v668 = vmax.f32 %v456, 0.0
  %v669 = vmax.f32 %v459, 0.0
  %v670 = vmax.f32 %v464, 0.0
  %v671 = vmax.f32 %v467, 0.0
  %v672 = vmax.f32 %v472, 0.0
  %v673 = vmax.f32 %v475, 0.0
  %v674 = vmax.f32 %v480, 0.0
  %v675 = vmax.f32 %v483, 0.0
  %v676 = vmax.f32 %v488, 0.0
  %v677 = vmax.f32 %v491, 0.0
  %v678 = vmax.f32 %v496, 0.0
  %v679 = vmax.f32 %v499, 0.0
  %v680 = vmax.f32 %v504, 0.0
  %v681 = vmax.f32 %v507, 0.0
  %v682 = vmax.f32 %v512, 0.0
  %v683 = vmax.f32 %v515, 0.0
  %v684 = vmax.f32 %v520, 0.0
  %v685 = vmax.f32 %v523, 0.0
  %v686 = vmax.f32 %v528, 0.0
  %v687 = vmax.f32 %v531, 0.0
  %v688 = vmax.f32 %v536, 0.0
  %v689 = vmax.f32 %v539, 0.0
  %v690 = vmax.f32 %v544, 0.0
  %v691 = vmax.f32 %v547, 0.0
  %v692 = vmax.f32 %v552, 0.0
  %v693 = vmax.f32 %v555, 0.0
  %v694 = vmax.f32 %v560, 0.0
  %v695 = vmax.f32 %v563, 0.0
  %v696 = vmax.f32 %v568, 0.0
  %v697 = vmax.f32 %v571, 0.0
  %v698 = vmax.f32 %v576, 0.0
  %v699 = vmax.f32 %v579, 0.0
  %v700 = vmax.f32 %v584, 0.0
  %v701 = vmax.f32 %v587, 0.0
  %v702 = vmax.f32 %v592, 0.0
  %v703 = vmax.f32 %v595, 0.0
  %v704 = vmax.f32 %v600, 0.0
  %v705 = vmax.f32 %v603, 0.0
  %v706 = vmax.f32 %v608, 0.0
  %v707 = vmax.f32 %v611, 0.0
  %v708 = vmax.f32 %v616, 0.0
  %v709 = vmax.f32 %v619, 0.0
  %v710 = vmax.f32 %v624, 0.0
  %v711 = vmax.f32 %v627, 0.0
  %v712 = vmax.f32 %v632, 0.0
  %v713 = vmax.f32 %v635, 0.0
  %v714 = vmax.f32 %v640, 0.0
  %v715 = vmax.f32 %v643, 0.0
  %v716 = vmax.f32 %v648, 0.0
  %v717 = vmax.f32 %v651, 0.0
  %v718 = vsel %vm268, %v654, 0.0
  %v719 = vsel %vm268, %v655, 0.0
  %v720 = vadd.f32 %v718, %v719
  %v721 = vsel %vm268, %v656, 0.0
  %v722 = vadd.f32 %v720, %v721
  %v723 = vsel %vm268, %v657, 0.0
  %v724 = vadd.f32 %v722, %v723
  %v725 = vsel %vm268, %v658, 0.0
  %v726 = vadd.f32 %v724, %v725
  %v727 = vsel %vm268, %v659, 0.0
  %v728 = vadd.f32 %v726, %v727
  %v729 = vsel %vm268, %v660, 0.0
  %v730 = vadd.f32 %v728, %v729
  %v731 = vsel %vm268, %v661, 0.0
  %v732 = vadd.f32 %v730, %v731
  %v733 = vsel %vm268, %v662, 0.0
  %v734 = vadd.f32 %v732, %v733
  %v735 = vsel %vm268, %v663, 0.0
  %v736 = vadd.f32 %v734, %v735
  %v737 = vsel %vm268, %v664, 0.0
  %v738 = vadd.f32 %v736, %v737
  %v739 = vsel %vm268, %v665, 0.0
  %v740 = vadd.f32 %v738, %v739
  %v741 = vsel %vm268, %v666, 0.0
  %v742 = vadd.f32 %v740, %v741
  %v743 = vsel %vm268, %v667, 0.0
  %v744 = vadd.f32 %v742, %v743
  %v745 = vsel %vm268, %v668, 0.0
  %v746 = vadd.f32 %v744, %v745
  %v747 = vsel %vm268, %v669, 0.0
  %v748 = vadd.f32 %v746, %v747
  %v749 = vsel %vm268, %v670, 0.0
  %v750 = vadd.f32 %v748, %v749
  %v751 = vsel %vm268, %v671, 0.0
  %v752 = vadd.f32 %v750, %v751
  %v753 = vsel %vm268, %v672, 0.0
  %v754 = vadd.f32 %v752, %v753
  %v755 = vsel %vm268, %v673, 0.0
  %v756 = vadd.f32 %v754, %v755
  %v757 = vsel %vm268, %v674, 0.0
  %v758 = vadd.f32 %v756, %v757
  %v759 = vsel %vm268, %v675, 0.0
  %v760 = vadd.f32 %v758, %v759
  %v761 = vsel %vm268, %v676, 0.0
  %v762 = vadd.f32 %v760, %v761
  %v763 = vsel %vm268, %v677, 0.0
  %v764 = vadd.f32 %v762, %v763
  %v765 = vsel %vm268, %v678, 0.0
  %v766 = vadd.f32 %v764, %v765
  %v767 = vsel %vm268, %v679, 0.0
  %v768 = vadd.f32 %v766, %v767
  %v769 = vsel %vm268, %v680, 0.0
  %v770 = vadd.f32 %v768, %v769
  %v771 = vsel %vm268, %v681, 0.0
  %v772 = vadd.f32 %v770, %v771
  %v773 = vsel %vm268, %v682, 0.0
  %v774 = vadd.f32 %v772, %v773
  %v775 = vsel %vm268, %v683, 0.0
  %v776 = vadd.f32 %v774, %v775
  %v777 = vsel %vm268, %v684, 0.0
  %v778 = vadd.f32 %v776, %v777
  %v779 = vsel %vm268, %v685, 0.0
  %v780 = vadd.f32 %v778, %v779
  %v781 = vrot.slane %v780, 4
  %v782 = vadd.f32 %v780, %v781
  %v783 = vrot.slane %v782, 2
  %v784 = vadd.f32 %v782, %v783
  %v785 = vrot.slane %v784, 1
  %v786 = vadd.f32 %v784, %v785
  %v787 = vsel %vm268, %v686, 0.0
  %v788 = vsel %vm268, %v687, 0.0
  %v789 = vadd.f32 %v787, %v788
  %v790 = vsel %vm268, %v688, 0.0
  %v791 = vadd.f32 %v789, %v790
  %v792 = vsel %vm268, %v689, 0.0
  %v793 = vadd.f32 %v791, %v792
  %v794 = vsel %vm268, %v690, 0.0
  %v795 = vadd.f32 %v793, %v794
  %v796 = vsel %vm268, %v691, 0.0
  %v797 = vadd.f32 %v795, %v796
  %v798 = vsel %vm268, %v692, 0.0
  %v799 = vadd.f32 %v797, %v798
  %v800 = vsel %vm268, %v693, 0.0
  %v801 = vadd.f32 %v799, %v800
  %v802 = vsel %vm268, %v694, 0.0
  %v803 = vadd.f32 %v801, %v802
  %v804 = vsel %vm268, %v695, 0.0
  %v805 = vadd.f32 %v803, %v804
  %v806 = vsel %vm268, %v696, 0.0
  %v807 = vadd.f32 %v805, %v806
  %v808 = vsel %vm268, %v697, 0.0
  %v809 = vadd.f32 %v807, %v808
  %v810 = vsel %vm268, %v698, 0.0
  %v811 = vadd.f32 %v809, %v810
  %v812 = vsel %vm268, %v699, 0.0
  %v813 = vadd.f32 %v811, %v812
  %v814 = vsel %vm268, %v700, 0.0
  %v815 = vadd.f32 %v813, %v814
  %v816 = vsel %vm268, %v701, 0.0
  %v817 = vadd.f32 %v815, %v816
  %v818 = vsel %vm268, %v702, 0.0
  %v819 = vadd.f32 %v817, %v818
  %v820 = vsel %vm268, %v703, 0.0
  %v821 = vadd.f32 %v819, %v820
  %v822 = vsel %vm268, %v704, 0.0
  %v823 = vadd.f32 %v821, %v822
  %v824 = vsel %vm268, %v705, 0.0
  %v825 = vadd.f32 %v823, %v824
  %v826 = vsel %vm268, %v706, 0.0
  %v827 = vadd.f32 %v825, %v826
  %v828 = vsel %vm268, %v707, 0.0
  %v829 = vadd.f32 %v827, %v828
  %v830 = vsel %vm268, %v708, 0.0
  %v831 = vadd.f32 %v829, %v830
  %v832 = vsel %vm268, %v709, 0.0
  %v833 = vadd.f32 %v831, %v832
  %v834 = vsel %vm268, %v710, 0.0
  %v835 = vadd.f32 %v833, %v834
  %v836 = vsel %vm268, %v711, 0.0
  %v837 = vadd.f32 %v835, %v836
  %v838 = vsel %vm268, %v712, 0.0
  %v839 = vadd.f32 %v837, %v838
  %v840 = vsel %vm268, %v713, 0.0
  %v841 = vadd.f32 %v839, %v840
  %v842 = vsel %vm268, %v714, 0.0
  %v843 = vadd.f32 %v841, %v842
  %v844 = vsel %vm268, %v715, 0.0
  %v845 = vadd.f32 %v843, %v844
  %v846 = vsel %vm268, %v716, 0.0
  %v847 = vadd.f32 %v845, %v846
  %v848 = vsel %vm268, %v717, 0.0
  %v849 = vadd.f32 %v847, %v848
  %v850 = vrot.slane %v849, 4
  %v851 = vadd.f32 %v849, %v850
  %v852 = vrot.slane %v851, 2
  %v853 = vadd.f32 %v851, %v852
  %v854 = vrot.slane %v853, 1
  %v855 = vadd.f32 %v853, %v854
  %v856 = vmul.f32 %v786, 0.00390625
  %v857 = vmul.f32 %v855, 0.00390625
  %v858 = vld [vmem:[%s3] sm:$0xff]
  %v859 = vld [vmem:[%s3 + $0x8] sm:$0xff]
  %v860 = vld [vmem:[%s3 + $0x10] sm:$0xff]
  %v861 = vld [vmem:[%s3 + $0x18] sm:$0xff]
  %v862 = vld [vmem:[%s4] sm:$0x1]
  %v864 = vlaneseq
  %v865 = vshrl.u32 %v864, 7
  %v866 = vsub.s32 0, %v865
  %v867 = vrot.slane %v862, %v866
  %vm871 = vcmask 1041409
  %v872 = vsel %vm871, %v857, %v856
  %v873 = vsel %vm268, %v872, 0
  %875 = vmatprep.subr.mxu0 0.0
  %876 = vmatpush1.msra.mxu0 0.0
  %877 = vmatprep.subr.mxu0 0.0
  %878 = vmatpush1.msra.mxu0 0.0
  %879 = vmatprep.subr.mxu0 0.0
  %880 = vmatpush1.msra.mxu0 0.0
  %881 = vmatprep.subr.mxu0 0.0
  %882 = vmatpush1.msra.mxu0 0.0
  %883 = vmatprep.subr.mxu0 0.0
  %884 = vmatpush1.msra.mxu0 0.0
  %885 = vmatprep.subr.mxu0 0.0
  %886 = vmatpush1.msra.mxu0 0.0
  %887 = vmatprep.subr.mxu0 0.0
  %888 = vmatpush1.msra.mxu0 0.0
  %889 = vmatprep.subr.mxu0 0.0
  %890 = vmatpush1.msra.mxu0 0.0
  %891 = vmatprep.subr.mxu0 0.0
  %892 = vmatpush1.msra.mxu0 0.0
  %893 = vmatprep.subr.mxu0 0.0
  %894 = vmatpush1.msra.mxu0 0.0
  %895 = vmatprep.subr.mxu0 0.0
  %896 = vmatpush1.msra.mxu0 0.0
  %897 = vmatprep.subr.mxu0 0.0
  %898 = vmatpush1.msra.mxu0 0.0
  %899 = vmatprep.subr.mxu0 0.0
  %900 = vmatpush1.msra.mxu0 %v861
  %901 = vmatprep.subr.mxu0 0.0
  %902 = vmatpush1.msra.mxu0 %v860
  %903 = vmatprep.subr.mxu0 0.0
  %904 = vmatpush1.msra.mxu0 %v859
  %905 = vmatprep.subr.mxu0 0.0
  %906 = vmatpush1.msra.mxu0 %v858
  %907 = vmatprep.subr.mxu0 0.0
  %908 = vmatpush2.msra.mxu0 0.0
  %909 = vmatprep.subr.mxu0 0.0
  %910 = vmatpush2.msra.mxu0 0.0
  %911 = vmatprep.subr.mxu0 0.0
  %912 = vmatpush2.msra.mxu0 0.0
  %913 = vmatprep.subr.mxu0 0.0
  %914 = vmatpush2.msra.mxu0 0.0
  %915 = vmatprep.subr.mxu0 0.0
  %916 = vmatpush2.msra.mxu0 0.0
  %917 = vmatprep.subr.mxu0 0.0
  %918 = vmatpush2.msra.mxu0 0.0
  %919 = vmatprep.subr.mxu0 0.0
  %920 = vmatpush2.msra.mxu0 0.0
  %921 = vmatprep.subr.mxu0 0.0
  %922 = vmatpush2.msra.mxu0 0.0
  %923 = vmatprep.subr.mxu0 0.0
  %924 = vmatpush2.msra.mxu0 0.0
  %925 = vmatprep.subr.mxu0 0.0
  %926 = vmatpush2.msra.mxu0 0.0
  %927 = vmatprep.subr.mxu0 0.0
  %928 = vmatpush2.msra.mxu0 0.0
  %929 = vmatprep.subr.mxu0 0.0
  %930 = vmatpush2.msra.mxu0 0.0
  %931 = vmatprep.subr.mxu0 0.0
  %932 = vmatpush2.msra.mxu0 0.0
  %933 = vmatprep.subr.mxu0 0.0
  %934 = vmatpush2.msra.mxu0 0.0
  %935 = vmatprep.subr.mxu0 0.0
  %936 = vmatpush2.msra.mxu0 0.0
  %937 = vmatprep.subr.mxu0 0.0
  %938 = vmatpush2.msra.mxu0 0.0
  %939 = vmatprep.mubr.f32.mxu0 0.0
  %940 = vmatmul.mubr.f32.gmra.mxu0 %v873
  %v941 = vpop.f32.mrf.mxu0
  %v942 = vadd.f32 %v867, %v941
  %v943 = vpop.f32.mrf.mxu0
  %944 = vdwg.mxu0
  %945 = vst [vmem:[%s5] sm:$0x3] %v942
  // Predicated region
  $region22: #{residual_only_forward.1} parent=0 // pred_check
    _
  $region23: #{residual_only_forward.1} parent=0 // pred_check_branch
    %947 = sbr.rel (0) target = $region25
  $region24: #{residual_only_forward.1} parent=0 // pred_region
    _
  $region25: #{residual_only_forward.1} parent=0 // pred_fallthru
    _
  // Predicated region
  $region26: #{residual_only_forward.1} parent=0 // pred_check
    _
  $region27: #{residual_only_forward.1} parent=0 // pred_check_branch
    %949 = sbr.rel (0) target = $region29
  $region28: #{residual_only_forward.1} parent=0 // pred_region
    _
  $region29: #{residual_only_forward.1} parent=0 // pred_fallthru
    _

</llo_original>
